<compile_context>
chip_gen: v7x
topology: tpu7x:2x2x1
jax: 0.10.0
libtpu: 0.0.40
codegen_flags: <defaults>
</compile_context>

<pallas_src>
import jax
import jax.numpy as jnp
from jax.experimental import pallas as pl
from jax.experimental.pallas import tpu as pltpu

# ----------------------------- model dims (small demo) -----------------------------
B = 2                 # batch
CIN = 3               # RGB input channels (ResNeSt expects 3)
H = W = 16            # spatial
NUM_FLTRS = 32        # stand-in for model.fc.in_features (2048 in real ResNeSt-101)
N_CLASS = 8           # n_class_distribution
N_REG = 4             # n_regression
KSIZE = 3             # stem conv kernel
KDIM = KSIZE * KSIZE * CIN  # im2col K = 27

# padded layout constants for lane/sublane-dense outputs
B_PAD = 8             # pad batch rows to one full sublane group
OUT_PAD = 128         # pad head output lanes to one full vreg lane width
M = B * H * W         # folded matmul M dimension = 512


# ----------------------------- Pallas kernel -----------------------------
def dld_kernel(patches_ref,   # (M, KDIM)          im2col'ed input, batch folded into M
               wc_ref,        # (KDIM, NUM_FLTRS)  stem conv weight (reshaped)
               bc_ref,        # (1, NUM_FLTRS)     stem conv bias
               pool_ref,      # (B_PAD, M)         block-diagonal 1/(H*W) pooling matrix
               wfc_ref,       # (NUM_FLTRS, OUT_PAD)  fc weight, zero-padded to 128 lanes
               bfc_ref,       # (1, OUT_PAD)
               wr_ref,        # (OUT_PAD, OUT_PAD)    regressor weight, zero-padded
               br_ref,        # (1, OUT_PAD)
               cls_out_ref,   # (B_PAD, OUT_PAD)   lane-dense class-score slab
               reg_out_ref):  # (B_PAD, OUT_PAD)   lane-dense regression slab
    # stem conv expressed as one MXU matmul (all batch rows at once) + bias + ReLU
    conv = jnp.dot(patches_ref[...], wc_ref[...],
                   preferred_element_type=jnp.float32)          # (M, NUM_FLTRS)
    conv = jnp.maximum(conv + bc_ref[...], 0.0)

    # global average pool as an MXU matmul: rows of pool average each batch's H*W rows
    feat = jnp.dot(pool_ref[...], conv,
                   preferred_element_type=jnp.float32)          # (B_PAD, NUM_FLTRS)

    # fc head: class distribution scores (padded lanes stay zero by construction)
    cls = jnp.dot(feat, wfc_ref[...],
                  preferred_element_type=jnp.float32) + bfc_ref[...]   # (B_PAD, OUT_PAD)

    # regressor head consumes the class scores
    reg = jnp.dot(cls, wr_ref[...],
                  preferred_element_type=jnp.float32) + br_ref[...]    # (B_PAD, OUT_PAD)

    cls_out_ref[...] = cls.astype(cls_out_ref.dtype)
    reg_out_ref[...] = reg.astype(reg_out_ref.dtype)


# ----------------------------- wrapper -----------------------------
def im2col_3x3(x_nchw):
    """NCHW -> [B, H*W, 27] patch matrix for a 3x3 / stride-1 / pad-1 conv."""
    x = jnp.transpose(x_nchw, (0, 2, 3, 1))                    # NHWC
    xp = jnp.pad(x, ((0, 0), (1, 1), (1, 1), (0, 0)))
    cols = []
    for dy in range(KSIZE):
        for dx in range(KSIZE):
            cols.append(xp[:, dy:dy + H, dx:dx + W, :])        # (B, H, W, CIN)
    patches = jnp.concatenate(cols, axis=-1)                   # (B, H, W, 27) [dy,dx,cin order]
    return patches.reshape(B, H * W, KDIM)


def dld_forward(x_nchw, params):
    wc, bc, wfc, bfc, wr, br = params

    # im2col in the wrapper; batch folded into the matmul M dimension.
    patches = im2col_3x3(x_nchw).astype(jnp.float32).reshape(M, KDIM)

    # block-diagonal pooling matrix: row b holds 1/(H*W) over its batch's H*W columns.
    pool = jnp.kron(jnp.eye(B, dtype=jnp.float32),
                    jnp.ones((1, H * W), jnp.float32)) / float(H * W)   # (B, M)
    pool = jnp.concatenate(
        [pool, jnp.zeros((B_PAD - B, M), jnp.float32)], axis=0)         # (B_PAD, M)

    # zero-pad head weights/biases so kernel outputs are full (B_PAD, 128) slabs.
    wfc_p = jnp.zeros((NUM_FLTRS, OUT_PAD), jnp.float32).at[:, :N_CLASS].set(wfc)
    bfc_p = jnp.zeros((1, OUT_PAD), jnp.float32).at[:, :N_CLASS].set(bfc)
    wr_p = jnp.zeros((OUT_PAD, OUT_PAD), jnp.float32).at[:N_CLASS, :N_REG].set(wr)
    br_p = jnp.zeros((1, OUT_PAD), jnp.float32).at[:, :N_REG].set(br)

    grid_spec = pltpu.PrefetchScalarGridSpec(
        num_scalar_prefetch=0,
        grid=(1,),                                 # single fused step: no per-batch overhead
        in_specs=[
            pl.BlockSpec((M, KDIM), lambda i: (0, 0)),
            pl.BlockSpec((KDIM, NUM_FLTRS), lambda i: (0, 0)),
            pl.BlockSpec((1, NUM_FLTRS), lambda i: (0, 0)),
            pl.BlockSpec((B_PAD, M), lambda i: (0, 0)),
            pl.BlockSpec((NUM_FLTRS, OUT_PAD), lambda i: (0, 0)),
            pl.BlockSpec((1, OUT_PAD), lambda i: (0, 0)),
            pl.BlockSpec((OUT_PAD, OUT_PAD), lambda i: (0, 0)),
            pl.BlockSpec((1, OUT_PAD), lambda i: (0, 0)),
        ],
        out_specs=[
            pl.BlockSpec((B_PAD, OUT_PAD), lambda i: (0, 0)),
            pl.BlockSpec((B_PAD, OUT_PAD), lambda i: (0, 0)),
        ],
    )

    cls_pad, reg_pad = pl.pallas_call(
        dld_kernel,
        out_shape=(
            jax.ShapeDtypeStruct((B_PAD, OUT_PAD), jnp.float32),
            jax.ShapeDtypeStruct((B_PAD, OUT_PAD), jnp.float32),
        ),
        grid_spec=grid_spec,
        compiler_params=pltpu.CompilerParams(
            dimension_semantics=("arbitrary",),
        ),
    )(patches, wc, bc, pool, wfc_p, bfc_p, wr_p, br_p)

    # slice the padded slabs back to the model's true output shapes.
    return cls_pad[:B, :N_CLASS], reg_pad[:B, :N_REG]


def reference_forward(x_nchw, params):
    """Pure-JAX reference for correctness checking."""
    wc, bc, wfc, bfc, wr, br = params
    patches = im2col_3x3(x_nchw).astype(jnp.float32)           # (B, H*W, 27)
    conv = jnp.maximum(jnp.einsum('bpk,kc->bpc', patches, wc) + bc, 0.0)
    feat = jnp.mean(conv, axis=1)                              # (B, NUM_FLTRS)
    cls = feat @ wfc + bfc
    reg = cls @ wr + br
    return cls, reg


def init_params(key):
    k1, k2, k3, k4, k5, k6 = jax.random.split(key, 6)
    wc = jax.random.normal(k1, (KDIM, NUM_FLTRS), jnp.float32) * 0.1
    bc = jax.random.normal(k2, (1, NUM_FLTRS), jnp.float32) * 0.01
    wfc = jax.random.normal(k3, (NUM_FLTRS, N_CLASS), jnp.float32) * 0.1
    bfc = jax.random.normal(k4, (1, N_CLASS), jnp.float32) * 0.01
    wr = jax.random.normal(k5, (N_CLASS, N_REG), jnp.float32) * 0.1
    br = jax.random.normal(k6, (1, N_REG), jnp.float32) * 0.01
    return wc, bc, wfc, bfc, wr, br


if __name__ == "__main__":
    key = jax.random.PRNGKey(0)
    kx, kp = jax.random.split(key)
    x = jax.random.normal(kx, (B, CIN, H, W), jnp.float32)     # NCHW, like PyTorch
    params = init_params(kp)

    cls_scores, reg_scores = jax.block_until_ready(dld_forward(x, params))
    cls_ref, reg_ref = reference_forward(x, params)

    assert cls_scores.shape == (B, N_CLASS) and reg_scores.shape == (B, N_REG)
    assert jnp.allclose(cls_scores, cls_ref, atol=1e-4, rtol=1e-4)
    assert jnp.allclose(reg_scores, reg_ref, atol=1e-4, rtol=1e-4)

    print("KERNEL_OK")
</pallas_src>

<mosaic_0001>
module attributes {stable_mosaic.version = 11 : i64} {
  func.func @dld_kernel(%arg0: i32, %arg1: memref<512x27xf32, #tpu.memory_space<vmem>>, %arg2: memref<27x32xf32, #tpu.memory_space<vmem>>, %arg3: memref<1x32xf32, #tpu.memory_space<vmem>>, %arg4: memref<8x512xf32, #tpu.memory_space<vmem>>, %arg5: memref<32x128xf32, #tpu.memory_space<vmem>>, %arg6: memref<1x128xf32, #tpu.memory_space<vmem>>, %arg7: memref<128x128xf32, #tpu.memory_space<vmem>>, %arg8: memref<1x128xf32, #tpu.memory_space<vmem>>, %arg9: memref<8x128xf32, #tpu.memory_space<vmem>>, %arg10: memref<8x128xf32, #tpu.memory_space<vmem>>) attributes {dimension_semantics = [#tpu.dimension_semantics<arbitrary>], iteration_bounds = array<i64: 1>, scalar_prefetch = 0 : i64, scratch_operands = 0 : i64, tpu.core_type = #tpu.core_type<tc>, window_params = [{pipeline_mode = #tpu.pipeline_mode<synchronous>, transform_indices = @transform_0, window_bounds = array<i64: 512, 27>}, {pipeline_mode = #tpu.pipeline_mode<synchronous>, transform_indices = @transform_1, window_bounds = array<i64: 27, 32>}, {pipeline_mode = #tpu.pipeline_mode<synchronous>, transform_indices = @transform_2, window_bounds = array<i64: 1, 32>}, {pipeline_mode = #tpu.pipeline_mode<synchronous>, transform_indices = @transform_3, window_bounds = array<i64: 8, 512>}, {pipeline_mode = #tpu.pipeline_mode<synchronous>, transform_indices = @transform_4, window_bounds = array<i64: 32, 128>}, {pipeline_mode = #tpu.pipeline_mode<synchronous>, transform_indices = @transform_5, window_bounds = array<i64: 1, 128>}, {pipeline_mode = #tpu.pipeline_mode<synchronous>, transform_indices = @transform_6, window_bounds = array<i64: 128, 128>}, {pipeline_mode = #tpu.pipeline_mode<synchronous>, transform_indices = @transform_7, window_bounds = array<i64: 1, 128>}, {pipeline_mode = #tpu.pipeline_mode<synchronous>, transform_indices = @transform_8, window_bounds = array<i64: 8, 128>}, {pipeline_mode = #tpu.pipeline_mode<synchronous>, transform_indices = @transform_9, window_bounds = array<i64: 8, 128>}]} {
    %c0 = arith.constant 0 : index
    %c0_0 = arith.constant 0 : index
    %0 = vector.load %arg1[%c0, %c0_0] : memref<512x27xf32, #tpu.memory_space<vmem>>, vector<512x27xf32>
    %c0_1 = arith.constant 0 : index
    %c0_2 = arith.constant 0 : index
    %1 = vector.load %arg2[%c0_1, %c0_2] : memref<27x32xf32, #tpu.memory_space<vmem>>, vector<27x32xf32>
    %cst = arith.constant dense<0.000000e+00> : vector<512x32xf32>
    %2 = tpu.matmul %0, %1, %cst {dimension_numbers = #tpu.dot_dimension_numbers<[1], [0], [0], [1], [0, 0, 1, 1], [], []>} : vector<512x27xf32>, vector<27x32xf32>, vector<512x32xf32> -> vector<512x32xf32>
    %c0_3 = arith.constant 0 : index
    %c0_4 = arith.constant 0 : index
    %3 = vector.load %arg3[%c0_3, %c0_4] : memref<1x32xf32, #tpu.memory_space<vmem>>, vector<1x32xf32>
    %4 = vector.broadcast %3 : vector<1x32xf32> to vector<512x32xf32>
    %5 = arith.addf %2, %4 : vector<512x32xf32>
    %cst_5 = arith.constant 0.000000e+00 : f32
    %6 = vector.broadcast %cst_5 : f32 to vector<512x32xf32>
    %7 = arith.maximumf %5, %6 : vector<512x32xf32>
    %c0_6 = arith.constant 0 : index
    %c0_7 = arith.constant 0 : index
    %8 = vector.load %arg4[%c0_6, %c0_7] : memref<8x512xf32, #tpu.memory_space<vmem>>, vector<8x512xf32>
    %cst_8 = arith.constant dense<0.000000e+00> : vector<8x32xf32>
    %9 = tpu.matmul %8, %7, %cst_8 {dimension_numbers = #tpu.dot_dimension_numbers<[1], [0], [0], [1], [0, 0, 1, 1], [], []>} : vector<8x512xf32>, vector<512x32xf32>, vector<8x32xf32> -> vector<8x32xf32>
    %c0_9 = arith.constant 0 : index
    %c0_10 = arith.constant 0 : index
    %10 = vector.load %arg5[%c0_9, %c0_10] : memref<32x128xf32, #tpu.memory_space<vmem>>, vector<32x128xf32>
    %cst_11 = arith.constant dense<0.000000e+00> : vector<8x128xf32>
    %11 = tpu.matmul %9, %10, %cst_11 {dimension_numbers = #tpu.dot_dimension_numbers<[1], [0], [0], [1], [0, 0, 1, 1], [], []>} : vector<8x32xf32>, vector<32x128xf32>, vector<8x128xf32> -> vector<8x128xf32>
    %c0_12 = arith.constant 0 : index
    %c0_13 = arith.constant 0 : index
    %12 = vector.load %arg6[%c0_12, %c0_13] : memref<1x128xf32, #tpu.memory_space<vmem>>, vector<1x128xf32>
    %13 = vector.broadcast %12 : vector<1x128xf32> to vector<8x128xf32>
    %14 = arith.addf %11, %13 : vector<8x128xf32>
    %c0_14 = arith.constant 0 : index
    %c0_15 = arith.constant 0 : index
    %15 = vector.load %arg7[%c0_14, %c0_15] : memref<128x128xf32, #tpu.memory_space<vmem>>, vector<128x128xf32>
    %cst_16 = arith.constant dense<0.000000e+00> : vector<8x128xf32>
    %16 = tpu.matmul %14, %15, %cst_16 {dimension_numbers = #tpu.dot_dimension_numbers<[1], [0], [0], [1], [0, 0, 1, 1], [], []>} : vector<8x128xf32>, vector<128x128xf32>, vector<8x128xf32> -> vector<8x128xf32>
    %c0_17 = arith.constant 0 : index
    %c0_18 = arith.constant 0 : index
    %17 = vector.load %arg8[%c0_17, %c0_18] : memref<1x128xf32, #tpu.memory_space<vmem>>, vector<1x128xf32>
    %18 = vector.broadcast %17 : vector<1x128xf32> to vector<8x128xf32>
    %19 = arith.addf %16, %18 : vector<8x128xf32>
    %c0_19 = arith.constant 0 : index
    %c0_20 = arith.constant 0 : index
    %20 = vector.load %arg9[%c0_19, %c0_20] : memref<8x128xf32, #tpu.memory_space<vmem>>, vector<8x128xf32>
    tpu.vector_store %arg9[%c0_19, %c0_20], %14 {strides = array<i32>} : memref<8x128xf32, #tpu.memory_space<vmem>>, vector<8x128xf32>,
    %c0_21 = arith.constant 0 : index
    %c0_22 = arith.constant 0 : index
    %21 = vector.load %arg10[%c0_21, %c0_22] : memref<8x128xf32, #tpu.memory_space<vmem>>, vector<8x128xf32>
    tpu.vector_store %arg10[%c0_21, %c0_22], %19 {strides = array<i32>} : memref<8x128xf32, #tpu.memory_space<vmem>>, vector<8x128xf32>,
    return
  }
  func.func @transform_0(%arg0: i32) -> (i32, i32) {
    %c0_i32 = arith.constant 0 : i32
    %c0_i32_0 = arith.constant 0 : i32
    %c0_i32_1 = arith.constant 0 : i32
    return %c0_i32, %c0_i32_0 : i32, i32
  }
  func.func @transform_1(%arg0: i32) -> (i32, i32) {
    %c0_i32 = arith.constant 0 : i32
    %c0_i32_0 = arith.constant 0 : i32
    %c0_i32_1 = arith.constant 0 : i32
    return %c0_i32, %c0_i32_0 : i32, i32
  }
  func.func @transform_2(%arg0: i32) -> (i32, i32) {
    %c0_i32 = arith.constant 0 : i32
    %c0_i32_0 = arith.constant 0 : i32
    %c0_i32_1 = arith.constant 0 : i32
    return %c0_i32, %c0_i32_0 : i32, i32
  }
  func.func @transform_3(%arg0: i32) -> (i32, i32) {
    %c0_i32 = arith.constant 0 : i32
    %c0_i32_0 = arith.constant 0 : i32
    %c0_i32_1 = arith.constant 0 : i32
    return %c0_i32, %c0_i32_0 : i32, i32
  }
  func.func @transform_4(%arg0: i32) -> (i32, i32) {
    %c0_i32 = arith.constant 0 : i32
    %c0_i32_0 = arith.constant 0 : i32
    %c0_i32_1 = arith.constant 0 : i32
    return %c0_i32, %c0_i32_0 : i32, i32
  }
  func.func @transform_5(%arg0: i32) -> (i32, i32) {
    %c0_i32 = arith.constant 0 : i32
    %c0_i32_0 = arith.constant 0 : i32
    %c0_i32_1 = arith.constant 0 : i32
    return %c0_i32, %c0_i32_0 : i32, i32
  }
  func.func @transform_6(%arg0: i32) -> (i32, i32) {
    %c0_i32 = arith.constant 0 : i32
    %c0_i32_0 = arith.constant 0 : i32
    %c0_i32_1 = arith.constant 0 : i32
    return %c0_i32, %c0_i32_0 : i32, i32
  }
  func.func @transform_7(%arg0: i32) -> (i32, i32) {
    %c0_i32 = arith.constant 0 : i32
    %c0_i32_0 = arith.constant 0 : i32
    %c0_i32_1 = arith.constant 0 : i32
    return %c0_i32, %c0_i32_0 : i32, i32
  }
  func.func @transform_8(%arg0: i32) -> (i32, i32) {
    %c0_i32 = arith.constant 0 : i32
    %c0_i32_0 = arith.constant 0 : i32
    %c0_i32_1 = arith.constant 0 : i32
    return %c0_i32, %c0_i32_0 : i32, i32
  }
  func.func @transform_9(%arg0: i32) -> (i32, i32) {
    %c0_i32 = arith.constant 0 : i32
    %c0_i32_0 = arith.constant 0 : i32
    %c0_i32_1 = arith.constant 0 : i32
    return %c0_i32, %c0_i32_0 : i32, i32
  }
}

</mosaic_0001>

<llo_original>
// kernel: tpu_custom_call.1
$region0: #{tpu_custom_call.1}
  #allocation0 [shape = 'u32[]', space=smem, size = 0x4, offset = 0x4, fixed_abs, tag = 'smem constant byte address 0x4 - core index']
  #allocation1 [shape = 'u32[144,128]{1,0:T(1,128)}', space=vmem, size = 0x12000, scoped, tag = 'internal scratch']
  %s0 = inlined_call_operand.vmem [shape: f32[512,27], index: 0, kind: input, shape index: {}]
  %s1 = inlined_call_operand.vmem [shape: f32[27,32], index: 1, kind: input, shape index: {}]
  %s2 = inlined_call_operand.vmem [shape: f32[1,32], index: 2, kind: input, shape index: {}]
  %s3 = inlined_call_operand.vmem [shape: f32[8,512], index: 3, kind: input, shape index: {}]
  %s4 = inlined_call_operand.vmem [shape: f32[32,128], index: 4, kind: input, shape index: {}]
  %s5 = inlined_call_operand.vmem [shape: f32[1,128], index: 5, kind: input, shape index: {}]
  %s6 = inlined_call_operand.vmem [shape: f32[128,128], index: 6, kind: input, shape index: {}]
  %s7 = inlined_call_operand.vmem [shape: f32[1,128], index: 7, kind: input, shape index: {}]
  %s8 = inlined_call_operand.hbm [shape: f32[8,128], index: 8, kind: output, shape index: {0}]
  %s9 = inlined_call_operand.hbm [shape: f32[8,128], index: 9, kind: output, shape index: {1}]
  %10 = xla_tuple %s8, %s9
  %s11 = sld [smem:[#allocation0]]
  $region50: #{tpu_custom_call.1} parent=0
    _
  %s13 = ssub.s32 1, %s11
  %s14 = scalar_select 0, %s13, %s11
  $region1: #{tpu_custom_call.1} parent=0
    #allocation2 [shape = 'u8[4096]{0}', space=vmem, size = 0x1000, scoped, tag = 'output window, operand 0, single buffered']
    #allocation3 [shape = 's32[1]{0}', space=sflag, size = 0x4, scoped, tag = 'scoped memory for tpu_custom_call.1']
    #allocation4 [shape = 'u8[4096]{0}', space=vmem, size = 0x1000, scoped, tag = 'output window, operand 1, single buffered']
    #allocation5 [shape = 's32[1]{0}', space=sflag, size = 0x4, scoped, tag = 'scoped memory for tpu_custom_call.1']
    %15 = vsyncpa [#allocation3], 0
    %16 = vsyncpa [#allocation5], 0
    // Predicated region
    $region2: #{tpu_custom_call.1} parent=1 // pred_check
      _
    $region3: #{tpu_custom_call.1} parent=1 // pred_check_branch
      %18 = sbr.rel (0) target = $region5
    $region4: #{tpu_custom_call.1} parent=1 // pred_region
      _
    $region5: #{tpu_custom_call.1} parent=1 // pred_fallthru
      _
    // Predicated region
    $region6: #{tpu_custom_call.1} parent=1 // pred_check
      _
    $region7: #{tpu_custom_call.1} parent=1 // pred_check_branch
      %20 = sbr.rel (0) target = $region9
    $region8: #{tpu_custom_call.1} parent=1 // pred_region
      _
    $region9: #{tpu_custom_call.1} parent=1 // pred_fallthru
      _
    // Predicated region
    $region10: #{tpu_custom_call.1} parent=1 // pred_check
      _
    $region11: #{tpu_custom_call.1} parent=1 // pred_check_branch
      %22 = sbr.rel (0) target = $region13
    $region12: #{tpu_custom_call.1} parent=1 // pred_region
      _
    $region13: #{tpu_custom_call.1} parent=1 // pred_fallthru
      _
    // Predicated region
    $region14: #{tpu_custom_call.1} parent=1 // pred_check
      _
    $region15: #{tpu_custom_call.1} parent=1 // pred_check_branch
      %24 = sbr.rel (0) target = $region17
    $region16: #{tpu_custom_call.1} parent=1 // pred_region
      _
    $region17: #{tpu_custom_call.1} parent=1 // pred_fallthru
      _
    // Predicated region
    $region18: #{tpu_custom_call.1} parent=1 // pred_check
      _
    $region19: #{tpu_custom_call.1} parent=1 // pred_check_branch
      %26 = sbr.rel (0) target = $region21
    $region20: #{tpu_custom_call.1} parent=1 // pred_region
      _
    $region21: #{tpu_custom_call.1} parent=1 // pred_fallthru
      _
    // Predicated region
    $region22: #{tpu_custom_call.1} parent=1 // pred_check
      _
    $region23: #{tpu_custom_call.1} parent=1 // pred_check_branch
      %28 = sbr.rel (0) target = $region25
    $region24: #{tpu_custom_call.1} parent=1 // pred_region
      _
    $region25: #{tpu_custom_call.1} parent=1 // pred_fallthru
      _
    // Predicated region
    $region26: #{tpu_custom_call.1} parent=1 // pred_check
      _
    $region27: #{tpu_custom_call.1} parent=1 // pred_check_branch
      %30 = sbr.rel (0) target = $region29
    $region28: #{tpu_custom_call.1} parent=1 // pred_region
      _
    $region29: #{tpu_custom_call.1} parent=1 // pred_fallthru
      _
    // Predicated region
    $region30: #{tpu_custom_call.1} parent=1 // pred_check
      _
    $region31: #{tpu_custom_call.1} parent=1 // pred_check_branch
      %32 = sbr.rel (0) target = $region33
    $region32: #{tpu_custom_call.1} parent=1 // pred_region
      _
    $region33: #{tpu_custom_call.1} parent=1 // pred_fallthru
      _
    %v33 = vld [vmem:[%s0] sm:$0xff]
    %v34 = vld [vmem:[%s0 + $0x8] sm:$0xff]
    %v35 = vld [vmem:[%s0 + $0x10] sm:$0xff]
    %v36 = vld [vmem:[%s0 + $0x18] sm:$0xff]
    %v37 = vld [vmem:[%s0 + $0x20] sm:$0xff]
    %v38 = vld [vmem:[%s0 + $0x28] sm:$0xff]
    %v39 = vld [vmem:[%s0 + $0x30] sm:$0xff]
    %v40 = vld [vmem:[%s0 + $0x38] sm:$0xff]
    %v41 = vld [vmem:[%s0 + $0x40] sm:$0xff]
    %v42 = vld [vmem:[%s0 + $0x48] sm:$0xff]
    %v43 = vld [vmem:[%s0 + $0x50] sm:$0xff]
    %v44 = vld [vmem:[%s0 + $0x58] sm:$0xff]
    %v45 = vld [vmem:[%s0 + $0x60] sm:$0xff]
    %v46 = vld [vmem:[%s0 + $0x68] sm:$0xff]
    %v47 = vld [vmem:[%s0 + $0x70] sm:$0xff]
    %v48 = vld [vmem:[%s0 + $0x78] sm:$0xff]
    %v49 = vld [vmem:[%s0 + $0x80] sm:$0xff]
    %v50 = vld [vmem:[%s0 + $0x88] sm:$0xff]
    %v51 = vld [vmem:[%s0 + $0x90] sm:$0xff]
    %v52 = vld [vmem:[%s0 + $0x98] sm:$0xff]
    %v53 = vld [vmem:[%s0 + $0xa0] sm:$0xff]
    %v54 = vld [vmem:[%s0 + $0xa8] sm:$0xff]
    %v55 = vld [vmem:[%s0 + $0xb0] sm:$0xff]
    %v56 = vld [vmem:[%s0 + $0xb8] sm:$0xff]
    %v57 = vld [vmem:[%s0 + $0xc0] sm:$0xff]
    %v58 = vld [vmem:[%s0 + $0xc8] sm:$0xff]
    %v59 = vld [vmem:[%s0 + $0xd0] sm:$0xff]
    %v60 = vld [vmem:[%s0 + $0xd8] sm:$0xff]
    %v61 = vld [vmem:[%s0 + $0xe0] sm:$0xff]
    %v62 = vld [vmem:[%s0 + $0xe8] sm:$0xff]
    %v63 = vld [vmem:[%s0 + $0xf0] sm:$0xff]
    %v64 = vld [vmem:[%s0 + $0xf8] sm:$0xff]
    %v65 = vld [vmem:[%s0 + $0x100] sm:$0xff]
    %v66 = vld [vmem:[%s0 + $0x108] sm:$0xff]
    %v67 = vld [vmem:[%s0 + $0x110] sm:$0xff]
    %v68 = vld [vmem:[%s0 + $0x118] sm:$0xff]
    %v69 = vld [vmem:[%s0 + $0x120] sm:$0xff]
    %v70 = vld [vmem:[%s0 + $0x128] sm:$0xff]
    %v71 = vld [vmem:[%s0 + $0x130] sm:$0xff]
    %v72 = vld [vmem:[%s0 + $0x138] sm:$0xff]
    %v73 = vld [vmem:[%s0 + $0x140] sm:$0xff]
    %v74 = vld [vmem:[%s0 + $0x148] sm:$0xff]
    %v75 = vld [vmem:[%s0 + $0x150] sm:$0xff]
    %v76 = vld [vmem:[%s0 + $0x158] sm:$0xff]
    %v77 = vld [vmem:[%s0 + $0x160] sm:$0xff]
    %v78 = vld [vmem:[%s0 + $0x168] sm:$0xff]
    %v79 = vld [vmem:[%s0 + $0x170] sm:$0xff]
    %v80 = vld [vmem:[%s0 + $0x178] sm:$0xff]
    %v81 = vld [vmem:[%s0 + $0x180] sm:$0xff]
    %v82 = vld [vmem:[%s0 + $0x188] sm:$0xff]
    %v83 = vld [vmem:[%s0 + $0x190] sm:$0xff]
    %v84 = vld [vmem:[%s0 + $0x198] sm:$0xff]
    %v85 = vld [vmem:[%s0 + $0x1a0] sm:$0xff]
    %v86 = vld [vmem:[%s0 + $0x1a8] sm:$0xff]
    %v87 = vld [vmem:[%s0 + $0x1b0] sm:$0xff]
    %v88 = vld [vmem:[%s0 + $0x1b8] sm:$0xff]
    %v89 = vld [vmem:[%s0 + $0x1c0] sm:$0xff]
    %v90 = vld [vmem:[%s0 + $0x1c8] sm:$0xff]
    %v91 = vld [vmem:[%s0 + $0x1d0] sm:$0xff]
    %v92 = vld [vmem:[%s0 + $0x1d8] sm:$0xff]
    %v93 = vld [vmem:[%s0 + $0x1e0] sm:$0xff]
    %v94 = vld [vmem:[%s0 + $0x1e8] sm:$0xff]
    %v95 = vld [vmem:[%s0 + $0x1f0] sm:$0xff]
    %v96 = vld [vmem:[%s0 + $0x1f8] sm:$0xff]
    %v97 = vld [vmem:[%s1] sm:$0xff]
    %v98 = vld [vmem:[%s1 + $0x8] sm:$0xff]
    %v99 = vld [vmem:[%s1 + $0x10] sm:$0xff]
    %v100 = vld [vmem:[%s1 + $0x18] sm:$0x7]
    %v101 = vld [vmem:[%s2] sm:$0x1]
    %v103 = vlaneseq
    %v104 = vshrl.u32 %v103, 7
    %v105 = vsub.s32 0, %v104
    %v106 = vrot.slane %v101, %v105
    %vm108 = vcmask 220160
    %v110 = vsel %vm108, %v33, 0
    %v113 = vsel %vm108, %v34, 0
    %v116 = vsel %vm108, %v35, 0
    %v119 = vsel %vm108, %v36, 0
    %v122 = vsel %vm108, %v37, 0
    %v125 = vsel %vm108, %v38, 0
    %v128 = vsel %vm108, %v39, 0
    %v131 = vsel %vm108, %v40, 0
    %v134 = vsel %vm108, %v41, 0
    %v137 = vsel %vm108, %v42, 0
    %v140 = vsel %vm108, %v43, 0
    %v143 = vsel %vm108, %v44, 0
    %v146 = vsel %vm108, %v45, 0
    %v149 = vsel %vm108, %v46, 0
    %v152 = vsel %vm108, %v47, 0
    %v155 = vsel %vm108, %v48, 0
    %v158 = vsel %vm108, %v49, 0
    %v161 = vsel %vm108, %v50, 0
    %v164 = vsel %vm108, %v51, 0
    %v167 = vsel %vm108, %v52, 0
    %v170 = vsel %vm108, %v53, 0
    %v173 = vsel %vm108, %v54, 0
    %v176 = vsel %vm108, %v55, 0
    %v179 = vsel %vm108, %v56, 0
    %v182 = vsel %vm108, %v57, 0
    %v185 = vsel %vm108, %v58, 0
    %v188 = vsel %vm108, %v59, 0
    %v191 = vsel %vm108, %v60, 0
    %v194 = vsel %vm108, %v61, 0
    %v197 = vsel %vm108, %v62, 0
    %v200 = vsel %vm108, %v63, 0
    %v203 = vsel %vm108, %v64, 0
    %v206 = vsel %vm108, %v65, 0
    %v209 = vsel %vm108, %v66, 0
    %v212 = vsel %vm108, %v67, 0
    %v215 = vsel %vm108, %v68, 0
    %v218 = vsel %vm108, %v69, 0
    %v221 = vsel %vm108, %v70, 0
    %v224 = vsel %vm108, %v71, 0
    %v227 = vsel %vm108, %v72, 0
    %v230 = vsel %vm108, %v73, 0
    %v233 = vsel %vm108, %v74, 0
    %v236 = vsel %vm108, %v75, 0
    %v239 = vsel %vm108, %v76, 0
    %v242 = vsel %vm108, %v77, 0
    %v245 = vsel %vm108, %v78, 0
    %v248 = vsel %vm108, %v79, 0
    %v251 = vsel %vm108, %v80, 0
    %v254 = vsel %vm108, %v81, 0
    %v257 = vsel %vm108, %v82, 0
    %v260 = vsel %vm108, %v83, 0
    %v263 = vsel %vm108, %v84, 0
    %v266 = vsel %vm108, %v85, 0
    %v269 = vsel %vm108, %v86, 0
    %v272 = vsel %vm108, %v87, 0
    %v275 = vsel %vm108, %v88, 0
    %v278 = vsel %vm108, %v89, 0
    %v281 = vsel %vm108, %v90, 0
    %v284 = vsel %vm108, %v91, 0
    %v287 = vsel %vm108, %v92, 0
    %v290 = vsel %vm108, %v93, 0
    %v293 = vsel %vm108, %v94, 0
    %v296 = vsel %vm108, %v95, 0
    %v299 = vsel %vm108, %v96, 0
    %vm301 = vcmask 1042432
    %v303 = vsel %vm301, %v100, 0
    %305 = vmatprep.subr.mxu0 0.0
    %306 = vmatpush1.msra.mxu0 %v97
    %307 = vmatprep.subr.mxu0 0.0
    %308 = vmatpush1.msra.mxu0 %v98
    %309 = vmatprep.subr.mxu0 0.0
    %310 = vmatpush1.msra.mxu0 %v99
    %311 = vmatprep.subr.mxu0 0.0
    %312 = vmatpush1.msra.mxu0 %v303
    %313 = vmatprep.subr.mxu0 0.0
    %314 = vmatpush1.msra.mxu0 0.0
    %315 = vmatprep.subr.mxu0 0.0
    %316 = vmatpush1.msra.mxu0 0.0
    %317 = vmatprep.subr.mxu0 0.0
    %318 = vmatpush1.msra.mxu0 0.0
    %319 = vmatprep.subr.mxu0 0.0
    %320 = vmatpush1.msra.mxu0 0.0
    %321 = vmatprep.subr.mxu0 0.0
    %322 = vmatpush1.msra.mxu0 0.0
    %323 = vmatprep.subr.mxu0 0.0
    %324 = vmatpush1.msra.mxu0 0.0
    %325 = vmatprep.subr.mxu0 0.0
    %326 = vmatpush1.msra.mxu0 0.0
    %327 = vmatprep.subr.mxu0 0.0
    %328 = vmatpush1.msra.mxu0 0.0
    %329 = vmatprep.subr.mxu0 0.0
    %330 = vmatpush1.msra.mxu0 0.0
    %331 = vmatprep.subr.mxu0 0.0
    %332 = vmatpush1.msra.mxu0 0.0
    %333 = vmatprep.subr.mxu0 0.0
    %334 = vmatpush1.msra.mxu0 0.0
    %335 = vmatprep.subr.mxu0 0.0
    %336 = vmatpush1.msra.mxu0 0.0
    %337 = vmatprep.subr.mxu0 0.0
    %338 = vmatpush1.msra.mxu0 0.0
    %339 = vmatprep.subr.mxu0 0.0
    %340 = vmatpush1.msra.mxu0 0.0
    %341 = vmatprep.subr.mxu0 0.0
    %342 = vmatpush1.msra.mxu0 0.0
    %343 = vmatprep.subr.mxu0 0.0
    %344 = vmatpush1.msra.mxu0 0.0
    %345 = vmatprep.subr.mxu0 0.0
    %346 = vmatpush1.msra.mxu0 0.0
    %347 = vmatprep.subr.mxu0 0.0
    %348 = vmatpush1.msra.mxu0 0.0
    %349 = vmatprep.subr.mxu0 0.0
    %350 = vmatpush1.msra.mxu0 0.0
    %351 = vmatprep.subr.mxu0 0.0
    %352 = vmatpush1.msra.mxu0 0.0
    %353 = vmatprep.subr.mxu0 0.0
    %354 = vmatpush1.msra.mxu0 0.0
    %355 = vmatprep.subr.mxu0 0.0
    %356 = vmatpush1.msra.mxu0 0.0
    %357 = vmatprep.subr.mxu0 0.0
    %358 = vmatpush1.msra.mxu0 0.0
    %359 = vmatprep.subr.mxu0 0.0
    %360 = vmatpush1.msra.mxu0 0.0
    %361 = vmatprep.subr.mxu0 0.0
    %362 = vmatpush1.msra.mxu0 0.0
    %363 = vmatprep.subr.mxu0 0.0
    %364 = vmatpush1.msra.mxu0 0.0
    %365 = vmatprep.subr.mxu0 0.0
    %366 = vmatpush1.msra.mxu0 0.0
    %367 = vmatprep.subr.mxu0 0.0
    %368 = vmatpush1.msra.mxu0 0.0
    %369 = vmatprep.mubr.f32.mxu0 0.0
    %370 = vmatmul.mubr.f32.gmra.mrb[0].mxu0 %v110
    %v371 = vpop.f32.mrb[0].mxu0
    %v372 = vadd.f32 %v106, %v371
    %v373 = vpop.f32.mrb[0].mxu0
    %374 = vmatprep.mubr.f32.mxu0 0.0
    %375 = vmatmul.mubr.f32.gmra.mrb[0].mxu0 %v113
    %v376 = vpop.f32.mrb[0].mxu0
    %v377 = vadd.f32 %v106, %v376
    %v378 = vpop.f32.mrb[0].mxu0
    %379 = vmatprep.mubr.f32.mxu0 0.0
    %380 = vmatmul.mubr.f32.gmra.mrb[0].mxu0 %v116
    %v381 = vpop.f32.mrb[0].mxu0
    %v382 = vadd.f32 %v106, %v381
    %v383 = vpop.f32.mrb[0].mxu0
    %384 = vmatprep.mubr.f32.mxu0 0.0
    %385 = vmatmul.mubr.f32.gmra.mrb[0].mxu0 %v119
    %v386 = vpop.f32.mrb[0].mxu0
    %v387 = vadd.f32 %v106, %v386
    %v388 = vpop.f32.mrb[0].mxu0
    %389 = vmatprep.mubr.f32.mxu0 0.0
    %390 = vmatmul.mubr.f32.gmra.mrb[0].mxu0 %v122
    %v391 = vpop.f32.mrb[0].mxu0
    %v392 = vadd.f32 %v106, %v391
    %v393 = vpop.f32.mrb[0].mxu0
    %394 = vmatprep.mubr.f32.mxu0 0.0
    %395 = vmatmul.mubr.f32.gmra.mrb[0].mxu0 %v125
    %v396 = vpop.f32.mrb[0].mxu0
    %v397 = vadd.f32 %v106, %v396
    %v398 = vpop.f32.mrb[0].mxu0
    %399 = vmatprep.mubr.f32.mxu0 0.0
    %400 = vmatmul.mubr.f32.gmra.mrb[0].mxu0 %v128
    %v401 = vpop.f32.mrb[0].mxu0
    %v402 = vadd.f32 %v106, %v401
    %v403 = vpop.f32.mrb[0].mxu0
    %404 = vmatprep.mubr.f32.mxu0 0.0
    %405 = vmatmul.mubr.f32.gmra.mrb[0].mxu0 %v131
    %v406 = vpop.f32.mrb[0].mxu0
    %v407 = vadd.f32 %v106, %v406
    %v408 = vpop.f32.mrb[0].mxu0
    %409 = vmatprep.mubr.f32.mxu0 0.0
    %410 = vmatmul.mubr.f32.gmra.mrb[0].mxu0 %v134
    %v411 = vpop.f32.mrb[0].mxu0
    %v412 = vadd.f32 %v106, %v411
    %v413 = vpop.f32.mrb[0].mxu0
    %414 = vmatprep.mubr.f32.mxu0 0.0
    %415 = vmatmul.mubr.f32.gmra.mrb[0].mxu0 %v137
    %v416 = vpop.f32.mrb[0].mxu0
    %v417 = vadd.f32 %v106, %v416
    %v418 = vpop.f32.mrb[0].mxu0
    %419 = vmatprep.mubr.f32.mxu0 0.0
    %420 = vmatmul.mubr.f32.gmra.mrb[0].mxu0 %v140
    %v421 = vpop.f32.mrb[0].mxu0
    %v422 = vadd.f32 %v106, %v421
    %v423 = vpop.f32.mrb[0].mxu0
    %424 = vmatprep.mubr.f32.mxu0 0.0
    %425 = vmatmul.mubr.f32.gmra.mrb[0].mxu0 %v143
    %v426 = vpop.f32.mrb[0].mxu0
    %v427 = vadd.f32 %v106, %v426
    %v428 = vpop.f32.mrb[0].mxu0
    %429 = vmatprep.mubr.f32.mxu0 0.0
    %430 = vmatmul.mubr.f32.gmra.mrb[0].mxu0 %v146
    %v431 = vpop.f32.mrb[0].mxu0
    %v432 = vadd.f32 %v106, %v431
    %v433 = vpop.f32.mrb[0].mxu0
    %434 = vmatprep.mubr.f32.mxu0 0.0
    %435 = vmatmul.mubr.f32.gmra.mrb[0].mxu0 %v149
    %v436 = vpop.f32.mrb[0].mxu0
    %v437 = vadd.f32 %v106, %v436
    %v438 = vpop.f32.mrb[0].mxu0
    %439 = vmatprep.mubr.f32.mxu0 0.0
    %440 = vmatmul.mubr.f32.gmra.mrb[0].mxu0 %v152
    %v441 = vpop.f32.mrb[0].mxu0
    %v442 = vadd.f32 %v106, %v441
    %v443 = vpop.f32.mrb[0].mxu0
    %444 = vmatprep.mubr.f32.mxu0 0.0
    %445 = vmatmul.mubr.f32.gmra.mrb[0].mxu0 %v155
    %v446 = vpop.f32.mrb[0].mxu0
    %v447 = vadd.f32 %v106, %v446
    %v448 = vpop.f32.mrb[0].mxu0
    %449 = vmatprep.mubr.f32.mxu0 0.0
    %450 = vmatmul.mubr.f32.gmra.mrb[0].mxu0 %v158
    %v451 = vpop.f32.mrb[0].mxu0
    %v452 = vadd.f32 %v106, %v451
    %v453 = vpop.f32.mrb[0].mxu0
    %454 = vmatprep.mubr.f32.mxu0 0.0
    %455 = vmatmul.mubr.f32.gmra.mrb[0].mxu0 %v161
    %v456 = vpop.f32.mrb[0].mxu0
    %v457 = vadd.f32 %v106, %v456
    %v458 = vpop.f32.mrb[0].mxu0
    %459 = vmatprep.mubr.f32.mxu0 0.0
    %460 = vmatmul.mubr.f32.gmra.mrb[0].mxu0 %v164
    %v461 = vpop.f32.mrb[0].mxu0
    %v462 = vadd.f32 %v106, %v461
    %v463 = vpop.f32.mrb[0].mxu0
    %464 = vmatprep.mubr.f32.mxu0 0.0
    %465 = vmatmul.mubr.f32.gmra.mrb[0].mxu0 %v167
    %v466 = vpop.f32.mrb[0].mxu0
    %v467 = vadd.f32 %v106, %v466
    %v468 = vpop.f32.mrb[0].mxu0
    %469 = vmatprep.mubr.f32.mxu0 0.0
    %470 = vmatmul.mubr.f32.gmra.mrb[0].mxu0 %v170
    %v471 = vpop.f32.mrb[0].mxu0
    %v472 = vadd.f32 %v106, %v471
    %v473 = vpop.f32.mrb[0].mxu0
    %474 = vmatprep.mubr.f32.mxu0 0.0
    %475 = vmatmul.mubr.f32.gmra.mrb[0].mxu0 %v173
    %v476 = vpop.f32.mrb[0].mxu0
    %v477 = vadd.f32 %v106, %v476
    %v478 = vpop.f32.mrb[0].mxu0
    %479 = vmatprep.mubr.f32.mxu0 0.0
    %480 = vmatmul.mubr.f32.gmra.mrb[0].mxu0 %v176
    %v481 = vpop.f32.mrb[0].mxu0
    %v482 = vadd.f32 %v106, %v481
    %v483 = vpop.f32.mrb[0].mxu0
    %484 = vmatprep.mubr.f32.mxu0 0.0
    %485 = vmatmul.mubr.f32.gmra.mrb[0].mxu0 %v179
    %v486 = vpop.f32.mrb[0].mxu0
    %v487 = vadd.f32 %v106, %v486
    %v488 = vpop.f32.mrb[0].mxu0
    %489 = vmatprep.mubr.f32.mxu0 0.0
    %490 = vmatmul.mubr.f32.gmra.mrb[0].mxu0 %v182
    %v491 = vpop.f32.mrb[0].mxu0
    %v492 = vadd.f32 %v106, %v491
    %v493 = vpop.f32.mrb[0].mxu0
    %494 = vmatprep.mubr.f32.mxu0 0.0
    %495 = vmatmul.mubr.f32.gmra.mrb[0].mxu0 %v185
    %v496 = vpop.f32.mrb[0].mxu0
    %v497 = vadd.f32 %v106, %v496
    %v498 = vpop.f32.mrb[0].mxu0
    %499 = vmatprep.mubr.f32.mxu0 0.0
    %500 = vmatmul.mubr.f32.gmra.mrb[0].mxu0 %v188
    %v501 = vpop.f32.mrb[0].mxu0
    %v502 = vadd.f32 %v106, %v501
    %v503 = vpop.f32.mrb[0].mxu0
    %504 = vmatprep.mubr.f32.mxu0 0.0
    %505 = vmatmul.mubr.f32.gmra.mrb[0].mxu0 %v191
    %v506 = vpop.f32.mrb[0].mxu0
    %v507 = vadd.f32 %v106, %v506
    %v508 = vpop.f32.mrb[0].mxu0
    %509 = vmatprep.mubr.f32.mxu0 0.0
    %510 = vmatmul.mubr.f32.gmra.mrb[0].mxu0 %v194
    %v511 = vpop.f32.mrb[0].mxu0
    %v512 = vadd.f32 %v106, %v511
    %v513 = vpop.f32.mrb[0].mxu0
    %514 = vmatprep.mubr.f32.mxu0 0.0
    %515 = vmatmul.mubr.f32.gmra.mrb[0].mxu0 %v197
    %v516 = vpop.f32.mrb[0].mxu0
    %v517 = vadd.f32 %v106, %v516
    %v518 = vpop.f32.mrb[0].mxu0
    %519 = vmatprep.mubr.f32.mxu0 0.0
    %520 = vmatmul.mubr.f32.gmra.mrb[0].mxu0 %v200
    %v521 = vpop.f32.mrb[0].mxu0
    %v522 = vadd.f32 %v106, %v521
    %v523 = vpop.f32.mrb[0].mxu0
    %524 = vmatprep.mubr.f32.mxu0 0.0
    %525 = vmatmul.mubr.f32.gmra.mrb[0].mxu0 %v203
    %v526 = vpop.f32.mrb[0].mxu0
    %v527 = vadd.f32 %v106, %v526
    %v528 = vpop.f32.mrb[0].mxu0
    %529 = vmatprep.mubr.f32.mxu0 0.0
    %530 = vmatmul.mubr.f32.gmra.mrb[0].mxu0 %v206
    %v531 = vpop.f32.mrb[0].mxu0
    %v532 = vadd.f32 %v106, %v531
    %v533 = vpop.f32.mrb[0].mxu0
    %534 = vmatprep.mubr.f32.mxu0 0.0
    %535 = vmatmul.mubr.f32.gmra.mrb[0].mxu0 %v209
    %v536 = vpop.f32.mrb[0].mxu0
    %v537 = vadd.f32 %v106, %v536
    %v538 = vpop.f32.mrb[0].mxu0
    %539 = vmatprep.mubr.f32.mxu0 0.0
    %540 = vmatmul.mubr.f32.gmra.mrb[0].mxu0 %v212
    %v541 = vpop.f32.mrb[0].mxu0
    %v542 = vadd.f32 %v106, %v541
    %v543 = vpop.f32.mrb[0].mxu0
    %544 = vmatprep.mubr.f32.mxu0 0.0
    %545 = vmatmul.mubr.f32.gmra.mrb[0].mxu0 %v215
    %v546 = vpop.f32.mrb[0].mxu0
    %v547 = vadd.f32 %v106, %v546
    %v548 = vpop.f32.mrb[0].mxu0
    %549 = vmatprep.mubr.f32.mxu0 0.0
    %550 = vmatmul.mubr.f32.gmra.mrb[0].mxu0 %v218
    %v551 = vpop.f32.mrb[0].mxu0
    %v552 = vadd.f32 %v106, %v551
    %v553 = vpop.f32.mrb[0].mxu0
    %554 = vmatprep.mubr.f32.mxu0 0.0
    %555 = vmatmul.mubr.f32.gmra.mrb[0].mxu0 %v221
    %v556 = vpop.f32.mrb[0].mxu0
    %v557 = vadd.f32 %v106, %v556
    %v558 = vpop.f32.mrb[0].mxu0
    %559 = vmatprep.mubr.f32.mxu0 0.0
    %560 = vmatmul.mubr.f32.gmra.mrb[0].mxu0 %v224
    %v561 = vpop.f32.mrb[0].mxu0
    %v562 = vadd.f32 %v106, %v561
    %v563 = vpop.f32.mrb[0].mxu0
    %564 = vmatprep.mubr.f32.mxu0 0.0
    %565 = vmatmul.mubr.f32.gmra.mrb[0].mxu0 %v227
    %v566 = vpop.f32.mrb[0].mxu0
    %v567 = vadd.f32 %v106, %v566
    %v568 = vpop.f32.mrb[0].mxu0
    %569 = vmatprep.mubr.f32.mxu0 0.0
    %570 = vmatmul.mubr.f32.gmra.mrb[0].mxu0 %v230
    %v571 = vpop.f32.mrb[0].mxu0
    %v572 = vadd.f32 %v106, %v571
    %v573 = vpop.f32.mrb[0].mxu0
    %574 = vmatprep.mubr.f32.mxu0 0.0
    %575 = vmatmul.mubr.f32.gmra.mrb[0].mxu0 %v233
    %v576 = vpop.f32.mrb[0].mxu0
    %v577 = vadd.f32 %v106, %v576
    %v578 = vpop.f32.mrb[0].mxu0
    %579 = vmatprep.mubr.f32.mxu0 0.0
    %580 = vmatmul.mubr.f32.gmra.mrb[0].mxu0 %v236
    %v581 = vpop.f32.mrb[0].mxu0
    %v582 = vadd.f32 %v106, %v581
    %v583 = vpop.f32.mrb[0].mxu0
    %584 = vmatprep.mubr.f32.mxu0 0.0
    %585 = vmatmul.mubr.f32.gmra.mrb[0].mxu0 %v239
    %v586 = vpop.f32.mrb[0].mxu0
    %v587 = vadd.f32 %v106, %v586
    %v588 = vpop.f32.mrb[0].mxu0
    %589 = vmatprep.mubr.f32.mxu0 0.0
    %590 = vmatmul.mubr.f32.gmra.mrb[0].mxu0 %v242
    %v591 = vpop.f32.mrb[0].mxu0
    %v592 = vadd.f32 %v106, %v591
    %v593 = vpop.f32.mrb[0].mxu0
    %594 = vmatprep.mubr.f32.mxu0 0.0
    %595 = vmatmul.mubr.f32.gmra.mrb[0].mxu0 %v245
    %v596 = vpop.f32.mrb[0].mxu0
    %v597 = vadd.f32 %v106, %v596
    %v598 = vpop.f32.mrb[0].mxu0
    %599 = vmatprep.mubr.f32.mxu0 0.0
    %600 = vmatmul.mubr.f32.gmra.mrb[0].mxu0 %v248
    %v601 = vpop.f32.mrb[0].mxu0
    %v602 = vadd.f32 %v106, %v601
    %v603 = vpop.f32.mrb[0].mxu0
    %604 = vmatprep.mubr.f32.mxu0 0.0
    %605 = vmatmul.mubr.f32.gmra.mrb[0].mxu0 %v251
    %v606 = vpop.f32.mrb[0].mxu0
    %v607 = vadd.f32 %v106, %v606
    %v608 = vpop.f32.mrb[0].mxu0
    %609 = vmatprep.mubr.f32.mxu0 0.0
    %610 = vmatmul.mubr.f32.gmra.mrb[0].mxu0 %v254
    %v611 = vpop.f32.mrb[0].mxu0
    %v612 = vadd.f32 %v106, %v611
    %v613 = vpop.f32.mrb[0].mxu0
    %614 = vmatprep.mubr.f32.mxu0 0.0
    %615 = vmatmul.mubr.f32.gmra.mrb[0].mxu0 %v257
    %v616 = vpop.f32.mrb[0].mxu0
    %v617 = vadd.f32 %v106, %v616
    %v618 = vpop.f32.mrb[0].mxu0
    %619 = vmatprep.mubr.f32.mxu0 0.0
    %620 = vmatmul.mubr.f32.gmra.mrb[0].mxu0 %v260
    %v621 = vpop.f32.mrb[0].mxu0
    %v622 = vadd.f32 %v106, %v621
    %v623 = vpop.f32.mrb[0].mxu0
    %624 = vmatprep.mubr.f32.mxu0 0.0
    %625 = vmatmul.mubr.f32.gmra.mrb[0].mxu0 %v263
    %v626 = vpop.f32.mrb[0].mxu0
    %v627 = vadd.f32 %v106, %v626
    %v628 = vpop.f32.mrb[0].mxu0
    %629 = vmatprep.mubr.f32.mxu0 0.0
    %630 = vmatmul.mubr.f32.gmra.mrb[0].mxu0 %v266
    %v631 = vpop.f32.mrb[0].mxu0
    %v632 = vadd.f32 %v106, %v631
    %v633 = vpop.f32.mrb[0].mxu0
    %634 = vmatprep.mubr.f32.mxu0 0.0
    %635 = vmatmul.mubr.f32.gmra.mrb[0].mxu0 %v269
    %v636 = vpop.f32.mrb[0].mxu0
    %v637 = vadd.f32 %v106, %v636
    %v638 = vpop.f32.mrb[0].mxu0
    %639 = vmatprep.mubr.f32.mxu0 0.0
    %640 = vmatmul.mubr.f32.gmra.mrb[0].mxu0 %v272
    %v641 = vpop.f32.mrb[0].mxu0
    %v642 = vadd.f32 %v106, %v641
    %v643 = vpop.f32.mrb[0].mxu0
    %644 = vmatprep.mubr.f32.mxu0 0.0
    %645 = vmatmul.mubr.f32.gmra.mrb[0].mxu0 %v275
    %v646 = vpop.f32.mrb[0].mxu0
    %v647 = vadd.f32 %v106, %v646
    %v648 = vpop.f32.mrb[0].mxu0
    %649 = vmatprep.mubr.f32.mxu0 0.0
    %650 = vmatmul.mubr.f32.gmra.mrb[0].mxu0 %v278
    %v651 = vpop.f32.mrb[0].mxu0
    %v652 = vadd.f32 %v106, %v651
    %v653 = vpop.f32.mrb[0].mxu0
    %654 = vmatprep.mubr.f32.mxu0 0.0
    %655 = vmatmul.mubr.f32.gmra.mrb[0].mxu0 %v281
    %v656 = vpop.f32.mrb[0].mxu0
    %v657 = vadd.f32 %v106, %v656
    %v658 = vpop.f32.mrb[0].mxu0
    %659 = vmatprep.mubr.f32.mxu0 0.0
    %660 = vmatmul.mubr.f32.gmra.mrb[0].mxu0 %v284
    %v661 = vpop.f32.mrb[0].mxu0
    %v662 = vadd.f32 %v106, %v661
    %v663 = vpop.f32.mrb[0].mxu0
    %664 = vmatprep.mubr.f32.mxu0 0.0
    %665 = vmatmul.mubr.f32.gmra.mrb[0].mxu0 %v287
    %v666 = vpop.f32.mrb[0].mxu0
    %v667 = vadd.f32 %v106, %v666
    %v668 = vpop.f32.mrb[0].mxu0
    %669 = vmatprep.mubr.f32.mxu0 0.0
    %670 = vmatmul.mubr.f32.gmra.mrb[0].mxu0 %v290
    %v671 = vpop.f32.mrb[0].mxu0
    %v672 = vadd.f32 %v106, %v671
    %v673 = vpop.f32.mrb[0].mxu0
    %674 = vmatprep.mubr.f32.mxu0 0.0
    %675 = vmatmul.mubr.f32.gmra.mrb[0].mxu0 %v293
    %v676 = vpop.f32.mrb[0].mxu0
    %v677 = vadd.f32 %v106, %v676
    %v678 = vpop.f32.mrb[0].mxu0
    %679 = vmatprep.mubr.f32.mxu0 0.0
    %680 = vmatmul.mubr.f32.gmra.mrb[0].mxu0 %v296
    %v681 = vpop.f32.mrb[0].mxu0
    %v682 = vadd.f32 %v106, %v681
    %v683 = vpop.f32.mrb[0].mxu0
    %684 = vmatprep.mubr.f32.mxu0 0.0
    %685 = vmatmul.mubr.f32.gmra.mrb[0].mxu0 %v299
    %v686 = vpop.f32.mrb[0].mxu0
    %v687 = vadd.f32 %v106, %v686
    %v688 = vpop.f32.mrb[0].mxu0
    %689 = vdwg.mxu0
    %v690 = vmax.f32 %v372, 0.0
    %v691 = vmax.f32 %v377, 0.0
    %v692 = vmax.f32 %v382, 0.0
    %v693 = vmax.f32 %v387, 0.0
    %v694 = vmax.f32 %v392, 0.0
    %v695 = vmax.f32 %v397, 0.0
    %v696 = vmax.f32 %v402, 0.0
    %v697 = vmax.f32 %v407, 0.0
    %v698 = vmax.f32 %v412, 0.0
    %v699 = vmax.f32 %v417, 0.0
    %v700 = vmax.f32 %v422, 0.0
    %v701 = vmax.f32 %v427, 0.0
    %v702 = vmax.f32 %v432, 0.0
    %v703 = vmax.f32 %v437, 0.0
    %v704 = vmax.f32 %v442, 0.0
    %v705 = vmax.f32 %v447, 0.0
    %v706 = vmax.f32 %v452, 0.0
    %v707 = vmax.f32 %v457, 0.0
    %v708 = vmax.f32 %v462, 0.0
    %v709 = vmax.f32 %v467, 0.0
    %v710 = vmax.f32 %v472, 0.0
    %v711 = vmax.f32 %v477, 0.0
    %v712 = vmax.f32 %v482, 0.0
    %v713 = vmax.f32 %v487, 0.0
    %v714 = vmax.f32 %v492, 0.0
    %v715 = vmax.f32 %v497, 0.0
    %v716 = vmax.f32 %v502, 0.0
    %v717 = vmax.f32 %v507, 0.0
    %v718 = vmax.f32 %v512, 0.0
    %v719 = vmax.f32 %v517, 0.0
    %v720 = vmax.f32 %v522, 0.0
    %v721 = vmax.f32 %v527, 0.0
    %v722 = vmax.f32 %v532, 0.0
    %v723 = vmax.f32 %v537, 0.0
    %v724 = vmax.f32 %v542, 0.0
    %v725 = vmax.f32 %v547, 0.0
    %v726 = vmax.f32 %v552, 0.0
    %v727 = vmax.f32 %v557, 0.0
    %v728 = vmax.f32 %v562, 0.0
    %v729 = vmax.f32 %v567, 0.0
    %v730 = vmax.f32 %v572, 0.0
    %v731 = vmax.f32 %v577, 0.0
    %v732 = vmax.f32 %v582, 0.0
    %v733 = vmax.f32 %v587, 0.0
    %v734 = vmax.f32 %v592, 0.0
    %v735 = vmax.f32 %v597, 0.0
    %v736 = vmax.f32 %v602, 0.0
    %v737 = vmax.f32 %v607, 0.0
    %v738 = vmax.f32 %v612, 0.0
    %v739 = vmax.f32 %v617, 0.0
    %v740 = vmax.f32 %v622, 0.0
    %v741 = vmax.f32 %v627, 0.0
    %v742 = vmax.f32 %v632, 0.0
    %v743 = vmax.f32 %v637, 0.0
    %v744 = vmax.f32 %v642, 0.0
    %v745 = vmax.f32 %v647, 0.0
    %v746 = vmax.f32 %v652, 0.0
    %v747 = vmax.f32 %v657, 0.0
    %v748 = vmax.f32 %v662, 0.0
    %v749 = vmax.f32 %v667, 0.0
    %v750 = vmax.f32 %v672, 0.0
    %v751 = vmax.f32 %v677, 0.0
    %v752 = vmax.f32 %v682, 0.0
    %v753 = vmax.f32 %v687, 0.0
    %v754 = vld [vmem:[%s3] sm:$0xff]
    %v755 = vld [vmem:[%s3 + $0x8] sm:$0xff]
    %v756 = vld [vmem:[%s3 + $0x10] sm:$0xff]
    %v757 = vld [vmem:[%s3 + $0x18] sm:$0xff]
    %758 = vmatprep.subr.mxu0 0.0
    %759 = vmatpush1.msra.mxu0 %v690
    %760 = vmatprep.subr.mxu0 0.0
    %761 = vmatpush1.msra.mxu0 %v691
    %762 = vmatprep.subr.mxu0 0.0
    %763 = vmatpush1.msra.mxu0 %v692
    %764 = vmatprep.subr.mxu0 0.0
    %765 = vmatpush1.msra.mxu0 %v693
    %766 = vmatprep.subr.mxu0 0.0
    %767 = vmatpush1.msra.mxu0 %v694
    %768 = vmatprep.subr.mxu0 0.0
    %769 = vmatpush1.msra.mxu0 %v695
    %770 = vmatprep.subr.mxu0 0.0
    %771 = vmatpush1.msra.mxu0 %v696
    %772 = vmatprep.subr.mxu0 0.0
    %773 = vmatpush1.msra.mxu0 %v697
    %774 = vmatprep.subr.mxu0 0.0
    %775 = vmatpush1.msra.mxu0 %v698
    %776 = vmatprep.subr.mxu0 0.0
    %777 = vmatpush1.msra.mxu0 %v699
    %778 = vmatprep.subr.mxu0 0.0
    %779 = vmatpush1.msra.mxu0 %v700
    %780 = vmatprep.subr.mxu0 0.0
    %781 = vmatpush1.msra.mxu0 %v701
    %782 = vmatprep.subr.mxu0 0.0
    %783 = vmatpush1.msra.mxu0 %v702
    %784 = vmatprep.subr.mxu0 0.0
    %785 = vmatpush1.msra.mxu0 %v703
    %786 = vmatprep.subr.mxu0 0.0
    %787 = vmatpush1.msra.mxu0 %v704
    %788 = vmatprep.subr.mxu0 0.0
    %789 = vmatpush1.msra.mxu0 %v705
    %790 = vmatprep.subr.mxu0 0.0
    %791 = vmatpush1.msra.mxu0 %v706
    %792 = vmatprep.subr.mxu0 0.0
    %793 = vmatpush1.msra.mxu0 %v707
    %794 = vmatprep.subr.mxu0 0.0
    %795 = vmatpush1.msra.mxu0 %v708
    %796 = vmatprep.subr.mxu0 0.0
    %797 = vmatpush1.msra.mxu0 %v709
    %798 = vmatprep.subr.mxu0 0.0
    %799 = vmatpush1.msra.mxu0 %v710
    %800 = vmatprep.subr.mxu0 0.0
    %801 = vmatpush1.msra.mxu0 %v711
    %802 = vmatprep.subr.mxu0 0.0
    %803 = vmatpush1.msra.mxu0 %v712
    %804 = vmatprep.subr.mxu0 0.0
    %805 = vmatpush1.msra.mxu0 %v713
    %806 = vmatprep.subr.mxu0 0.0
    %807 = vmatpush1.msra.mxu0 %v714
    %808 = vmatprep.subr.mxu0 0.0
    %809 = vmatpush1.msra.mxu0 %v715
    %810 = vmatprep.subr.mxu0 0.0
    %811 = vmatpush1.msra.mxu0 %v716
    %812 = vmatprep.subr.mxu0 0.0
    %813 = vmatpush1.msra.mxu0 %v717
    %814 = vmatprep.subr.mxu0 0.0
    %815 = vmatpush1.msra.mxu0 %v718
    %816 = vmatprep.subr.mxu0 0.0
    %817 = vmatpush1.msra.mxu0 %v719
    %818 = vmatprep.subr.mxu0 0.0
    %819 = vmatpush1.msra.mxu0 %v720
    %820 = vmatprep.subr.mxu0 0.0
    %821 = vmatpush1.msra.mxu0 %v721
    %822 = vmatprep.mubr.f32.mxu0 %v755
    %823 = vmatmul.mubr.f32.gmra.mrb[0].mxu0 %v754
    %v824 = vpop.f32.mrb[0].mxu0
    %v825 = vadd.f32 0.0, %v824
    %v826 = vpop.f32.mrb[0].mxu0
    %827 = vdwg.mxu0
    %828 = vmatprep.subr.mxu0 0.0
    %829 = vmatpush1.msra.mxu0 %v722
    %830 = vmatprep.subr.mxu0 0.0
    %831 = vmatpush1.msra.mxu0 %v723
    %832 = vmatprep.subr.mxu0 0.0
    %833 = vmatpush1.msra.mxu0 %v724
    %834 = vmatprep.subr.mxu0 0.0
    %835 = vmatpush1.msra.mxu0 %v725
    %836 = vmatprep.subr.mxu0 0.0
    %837 = vmatpush1.msra.mxu0 %v726
    %838 = vmatprep.subr.mxu0 0.0
    %839 = vmatpush1.msra.mxu0 %v727
    %840 = vmatprep.subr.mxu0 0.0
    %841 = vmatpush1.msra.mxu0 %v728
    %842 = vmatprep.subr.mxu0 0.0
    %843 = vmatpush1.msra.mxu0 %v729
    %844 = vmatprep.subr.mxu0 0.0
    %845 = vmatpush1.msra.mxu0 %v730
    %846 = vmatprep.subr.mxu0 0.0
    %847 = vmatpush1.msra.mxu0 %v731
    %848 = vmatprep.subr.mxu0 0.0
    %849 = vmatpush1.msra.mxu0 %v732
    %850 = vmatprep.subr.mxu0 0.0
    %851 = vmatpush1.msra.mxu0 %v733
    %852 = vmatprep.subr.mxu0 0.0
    %853 = vmatpush1.msra.mxu0 %v734
    %854 = vmatprep.subr.mxu0 0.0
    %855 = vmatpush1.msra.mxu0 %v735
    %856 = vmatprep.subr.mxu0 0.0
    %857 = vmatpush1.msra.mxu0 %v736
    %858 = vmatprep.subr.mxu0 0.0
    %859 = vmatpush1.msra.mxu0 %v737
    %860 = vmatprep.subr.mxu0 0.0
    %861 = vmatpush1.msra.mxu0 %v738
    %862 = vmatprep.subr.mxu0 0.0
    %863 = vmatpush1.msra.mxu0 %v739
    %864 = vmatprep.subr.mxu0 0.0
    %865 = vmatpush1.msra.mxu0 %v740
    %866 = vmatprep.subr.mxu0 0.0
    %867 = vmatpush1.msra.mxu0 %v741
    %868 = vmatprep.subr.mxu0 0.0
    %869 = vmatpush1.msra.mxu0 %v742
    %870 = vmatprep.subr.mxu0 0.0
    %871 = vmatpush1.msra.mxu0 %v743
    %872 = vmatprep.subr.mxu0 0.0
    %873 = vmatpush1.msra.mxu0 %v744
    %874 = vmatprep.subr.mxu0 0.0
    %875 = vmatpush1.msra.mxu0 %v745
    %876 = vmatprep.subr.mxu0 0.0
    %877 = vmatpush1.msra.mxu0 %v746
    %878 = vmatprep.subr.mxu0 0.0
    %879 = vmatpush1.msra.mxu0 %v747
    %880 = vmatprep.subr.mxu0 0.0
    %881 = vmatpush1.msra.mxu0 %v748
    %882 = vmatprep.subr.mxu0 0.0
    %883 = vmatpush1.msra.mxu0 %v749
    %884 = vmatprep.subr.mxu0 0.0
    %885 = vmatpush1.msra.mxu0 %v750
    %886 = vmatprep.subr.mxu0 0.0
    %887 = vmatpush1.msra.mxu0 %v751
    %888 = vmatprep.subr.mxu0 0.0
    %889 = vmatpush1.msra.mxu0 %v752
    %890 = vmatprep.subr.mxu0 0.0
    %891 = vmatpush1.msra.mxu0 %v753
    %892 = vmatprep.mubr.f32.mxu0 %v757
    %893 = vmatmul.mubr.f32.gmra.mrb[0].mxu0 %v756
    %v894 = vpop.f32.mrb[0].mxu0
    %v895 = vadd.f32 %v825, %v894
    %v896 = vpop.f32.mrb[0].mxu0
    %897 = vdwg.mxu0
    %v898 = vld [vmem:[%s4] sm:$0xff]
    %v899 = vld [vmem:[%s4 + $0x8] sm:$0xff]
    %v900 = vld [vmem:[%s4 + $0x10] sm:$0xff]
    %v901 = vld [vmem:[%s4 + $0x18] sm:$0xff]
    %v902 = vld [vmem:[%s5] sm:$0x1]
    %v904 = vlaneseq
    %v905 = vshrl.u32 %v904, 7
    %v906 = vsub.s32 0, %v905
    %v907 = vrot.slane %v902, %v906
    %vm909 = vcmask 261120
    %v911 = vsel %vm909, %v895, 0
    %913 = vmatprep.subr.mxu0 0.0
    %914 = vmatpush1.msra.mxu0 %v898
    %915 = vmatprep.subr.mxu0 0.0
    %916 = vmatpush1.msra.mxu0 %v899
    %917 = vmatprep.subr.mxu0 0.0
    %918 = vmatpush1.msra.mxu0 %v900
    %919 = vmatprep.subr.mxu0 0.0
    %920 = vmatpush1.msra.mxu0 %v901
    %921 = vmatprep.subr.mxu0 0.0
    %922 = vmatpush1.msra.mxu0 0.0
    %923 = vmatprep.subr.mxu0 0.0
    %924 = vmatpush1.msra.mxu0 0.0
    %925 = vmatprep.subr.mxu0 0.0
    %926 = vmatpush1.msra.mxu0 0.0
    %927 = vmatprep.subr.mxu0 0.0
    %928 = vmatpush1.msra.mxu0 0.0
    %929 = vmatprep.subr.mxu0 0.0
    %930 = vmatpush1.msra.mxu0 0.0
    %931 = vmatprep.subr.mxu0 0.0
    %932 = vmatpush1.msra.mxu0 0.0
    %933 = vmatprep.subr.mxu0 0.0
    %934 = vmatpush1.msra.mxu0 0.0
    %935 = vmatprep.subr.mxu0 0.0
    %936 = vmatpush1.msra.mxu0 0.0
    %937 = vmatprep.subr.mxu0 0.0
    %938 = vmatpush1.msra.mxu0 0.0
    %939 = vmatprep.subr.mxu0 0.0
    %940 = vmatpush1.msra.mxu0 0.0
    %941 = vmatprep.subr.mxu0 0.0
    %942 = vmatpush1.msra.mxu0 0.0
    %943 = vmatprep.subr.mxu0 0.0
    %944 = vmatpush1.msra.mxu0 0.0
    %945 = vmatprep.subr.mxu0 0.0
    %946 = vmatpush1.msra.mxu0 0.0
    %947 = vmatprep.subr.mxu0 0.0
    %948 = vmatpush1.msra.mxu0 0.0
    %949 = vmatprep.subr.mxu0 0.0
    %950 = vmatpush1.msra.mxu0 0.0
    %951 = vmatprep.subr.mxu0 0.0
    %952 = vmatpush1.msra.mxu0 0.0
    %953 = vmatprep.subr.mxu0 0.0
    %954 = vmatpush1.msra.mxu0 0.0
    %955 = vmatprep.subr.mxu0 0.0
    %956 = vmatpush1.msra.mxu0 0.0
    %957 = vmatprep.subr.mxu0 0.0
    %958 = vmatpush1.msra.mxu0 0.0
    %959 = vmatprep.subr.mxu0 0.0
    %960 = vmatpush1.msra.mxu0 0.0
    %961 = vmatprep.subr.mxu0 0.0
    %962 = vmatpush1.msra.mxu0 0.0
    %963 = vmatprep.subr.mxu0 0.0
    %964 = vmatpush1.msra.mxu0 0.0
    %965 = vmatprep.subr.mxu0 0.0
    %966 = vmatpush1.msra.mxu0 0.0
    %967 = vmatprep.subr.mxu0 0.0
    %968 = vmatpush1.msra.mxu0 0.0
    %969 = vmatprep.subr.mxu0 0.0
    %970 = vmatpush1.msra.mxu0 0.0
    %971 = vmatprep.subr.mxu0 0.0
    %972 = vmatpush1.msra.mxu0 0.0
    %973 = vmatprep.subr.mxu0 0.0
    %974 = vmatpush1.msra.mxu0 0.0
    %975 = vmatprep.subr.mxu0 0.0
    %976 = vmatpush1.msra.mxu0 0.0
    %977 = vmatprep.mubr.f32.mxu0 0.0
    %978 = vmatmul.mubr.f32.gmra.mrb[0].mxu0 %v911
    %v979 = vpop.f32.mrb[0].mxu0
    %v980 = vadd.f32 %v907, %v979
    %v981 = vpop.f32.mrb[0].mxu0
    %982 = vdwg.mxu0
    %v983 = vld [vmem:[%s6] sm:$0xff]
    %v984 = vld [vmem:[%s6 + $0x8] sm:$0xff]
    %v985 = vld [vmem:[%s6 + $0x10] sm:$0xff]
    %v986 = vld [vmem:[%s6 + $0x18] sm:$0xff]
    %v987 = vld [vmem:[%s6 + $0x20] sm:$0xff]
    %v988 = vld [vmem:[%s6 + $0x28] sm:$0xff]
    %v989 = vld [vmem:[%s6 + $0x30] sm:$0xff]
    %v990 = vld [vmem:[%s6 + $0x38] sm:$0xff]
    %v991 = vld [vmem:[%s6 + $0x40] sm:$0xff]
    %v992 = vld [vmem:[%s6 + $0x48] sm:$0xff]
    %v993 = vld [vmem:[%s6 + $0x50] sm:$0xff]
    %v994 = vld [vmem:[%s6 + $0x58] sm:$0xff]
    %v995 = vld [vmem:[%s6 + $0x60] sm:$0xff]
    %v996 = vld [vmem:[%s6 + $0x68] sm:$0xff]
    %v997 = vld [vmem:[%s6 + $0x70] sm:$0xff]
    %v998 = vld [vmem:[%s6 + $0x78] sm:$0xff]
    %v999 = vld [vmem:[%s7] sm:$0x1]
    %v1001 = vlaneseq
    %v1002 = vshrl.u32 %v1001, 7
    %v1003 = vsub.s32 0, %v1002
    %v1004 = vrot.slane %v999, %v1003
    %1006 = vmatprep.subr.mxu0 0.0
    %1007 = vmatpush1.msra.mxu0 %v983
    %1008 = vmatprep.subr.mxu0 0.0
    %1009 = vmatpush1.msra.mxu0 %v984
    %1010 = vmatprep.subr.mxu0 0.0
    %1011 = vmatpush1.msra.mxu0 %v985
    %1012 = vmatprep.subr.mxu0 0.0
    %1013 = vmatpush1.msra.mxu0 %v986
    %1014 = vmatprep.subr.mxu0 0.0
    %1015 = vmatpush1.msra.mxu0 %v987
    %1016 = vmatprep.subr.mxu0 0.0
    %1017 = vmatpush1.msra.mxu0 %v988
    %1018 = vmatprep.subr.mxu0 0.0
    %1019 = vmatpush1.msra.mxu0 %v989
    %1020 = vmatprep.subr.mxu0 0.0
    %1021 = vmatpush1.msra.mxu0 %v990
    %1022 = vmatprep.subr.mxu0 0.0
    %1023 = vmatpush1.msra.mxu0 %v991
    %1024 = vmatprep.subr.mxu0 0.0
    %1025 = vmatpush1.msra.mxu0 %v992
    %1026 = vmatprep.subr.mxu0 0.0
    %1027 = vmatpush1.msra.mxu0 %v993
    %1028 = vmatprep.subr.mxu0 0.0
    %1029 = vmatpush1.msra.mxu0 %v994
    %1030 = vmatprep.subr.mxu0 0.0
    %1031 = vmatpush1.msra.mxu0 %v995
    %1032 = vmatprep.subr.mxu0 0.0
    %1033 = vmatpush1.msra.mxu0 %v996
    %1034 = vmatprep.subr.mxu0 0.0
    %1035 = vmatpush1.msra.mxu0 %v997
    %1036 = vmatprep.subr.mxu0 0.0
    %1037 = vmatpush1.msra.mxu0 %v998
    %1038 = vmatprep.subr.mxu0 0.0
    %1039 = vmatpush1.msra.mxu0 0.0
    %1040 = vmatprep.subr.mxu0 0.0
    %1041 = vmatpush1.msra.mxu0 0.0
    %1042 = vmatprep.subr.mxu0 0.0
    %1043 = vmatpush1.msra.mxu0 0.0
    %1044 = vmatprep.subr.mxu0 0.0
    %1045 = vmatpush1.msra.mxu0 0.0
    %1046 = vmatprep.subr.mxu0 0.0
    %1047 = vmatpush1.msra.mxu0 0.0
    %1048 = vmatprep.subr.mxu0 0.0
    %1049 = vmatpush1.msra.mxu0 0.0
    %1050 = vmatprep.subr.mxu0 0.0
    %1051 = vmatpush1.msra.mxu0 0.0
    %1052 = vmatprep.subr.mxu0 0.0
    %1053 = vmatpush1.msra.mxu0 0.0
    %1054 = vmatprep.subr.mxu0 0.0
    %1055 = vmatpush1.msra.mxu0 0.0
    %1056 = vmatprep.subr.mxu0 0.0
    %1057 = vmatpush1.msra.mxu0 0.0
    %1058 = vmatprep.subr.mxu0 0.0
    %1059 = vmatpush1.msra.mxu0 0.0
    %1060 = vmatprep.subr.mxu0 0.0
    %1061 = vmatpush1.msra.mxu0 0.0
    %1062 = vmatprep.subr.mxu0 0.0
    %1063 = vmatpush1.msra.mxu0 0.0
    %1064 = vmatprep.subr.mxu0 0.0
    %1065 = vmatpush1.msra.mxu0 0.0
    %1066 = vmatprep.subr.mxu0 0.0
    %1067 = vmatpush1.msra.mxu0 0.0
    %1068 = vmatprep.subr.mxu0 0.0
    %1069 = vmatpush1.msra.mxu0 0.0
    %1070 = vmatprep.mubr.f32.mxu0 0.0
    %1071 = vmatmul.mubr.f32.gmra.mrb[0].mxu0 %v980
    %v1072 = vpop.f32.mrb[0].mxu0
    %v1073 = vadd.f32 %v1004, %v1072
    %v1074 = vpop.f32.mrb[0].mxu0
    %1075 = vdwg.mxu0
    %1076 = vst [vmem:[#allocation2] sm:$0xff] %v980
    %1077 = vst [vmem:[#allocation4] sm:$0xff] %v1073
    // Predicated region
    $region34: #{tpu_custom_call.1} parent=1 // pred_check
      _
    $region35: #{tpu_custom_call.1} parent=1 // pred_check_branch
      %1079 = sbr.rel (0) target = $region37
    $region36: #{tpu_custom_call.1} parent=1 // pred_region
      %s1081 = ssub.s32 128, 128
      %1082 = vsyncadd [#allocation3], %s1081
      %s1084 = sshll.u32 [#allocation2], 4
      %s1085 = int_to_ptr.vmem [resolvable:$true] %s1084
      %1087 = dma.vmem_to_hbm [thread:$0]  %s1085, 128, %s8, [#allocation3]
    $region37: #{tpu_custom_call.1} parent=1 // pred_fallthru
      _
    // Predicated region
    $region38: #{tpu_custom_call.1} parent=1 // pred_check
      _
    $region39: #{tpu_custom_call.1} parent=1 // pred_check_branch
      %1089 = sbr.rel (0) target = $region41
    $region40: #{tpu_custom_call.1} parent=1 // pred_region
      %s1091 = ssub.s32 128, 128
      %1092 = vsyncadd [#allocation5], %s1091
      %s1094 = sshll.u32 [#allocation4], 4
      %s1095 = int_to_ptr.vmem [resolvable:$true] %s1094
      %1097 = dma.vmem_to_hbm [thread:$0]  %s1095, 128, %s9, [#allocation5]
    $region41: #{tpu_custom_call.1} parent=1 // pred_fallthru
      _
    // Predicated region
    $region42: #{tpu_custom_call.1} parent=1 // pred_check
      _
    $region43: #{tpu_custom_call.1} parent=1 // pred_check_branch
      %1099 = sbr.rel (0) target = $region45
    $region44: #{tpu_custom_call.1} parent=1 // pred_region
      %1100 = dma.done [#allocation3], 128
    $region45: #{tpu_custom_call.1} parent=1 // pred_fallthru
      _
    // Predicated region
    $region46: #{tpu_custom_call.1} parent=1 // pred_check
      _
    $region47: #{tpu_custom_call.1} parent=1 // pred_check_branch
      %1102 = sbr.rel (0) target = $region49
    $region48: #{tpu_custom_call.1} parent=1 // pred_region
      %1103 = dma.done [#allocation5], 128
    $region49: #{tpu_custom_call.1} parent=1 // pred_fallthru
      _
    %1104 = vsyncpa [#allocation3], 1
    %1105 = vsyncpa [#allocation5], 1

</llo_original>
